<compile_context>
chip_gen: v7x
topology: tpu7x:2x2x1
jax: 0.10.0
libtpu: 0.0.40
codegen_flags: <defaults>
</compile_context>

<pallas_src>
import functools

import jax
import jax.numpy as jnp
from jax import lax
from jax.experimental import pallas as pl
from jax.experimental.pallas import tpu as pltpu

EPS = 1e-5
MOMENTUM = 0.1

_LANE = 128
_SUBLANE = 8
_PALLAS_MIN_ELEMS = 1 << 13           # crossover revisited: pad/strip copies gone
_DEFAULT_VMEM_BYTES = 64 * 1024 * 1024  # v7x per-TC VMEM; safe default everywhere


# ---------------------------------------------------------------------------
# Per-generation VMEM sizing
# ---------------------------------------------------------------------------
def _vmem_plan():
    """Return (scoped vmem_limit_bytes, tile working-set budget) for this chip."""
    phys = _DEFAULT_VMEM_BYTES
    try:
        info = pltpu.get_tpu_info()
        cap = getattr(info, "vmem_capacity_bytes", None)
        if cap:
            phys = int(cap)
    except Exception:
        pass
    limit = (phys * 3) // 4       # 48 MiB on v7x (64), 96 MiB on v5e/v6e (128)
    budget = (limit * 2) // 3     # headroom for compiler scratch / metadata
    return limit, budget


# ---------------------------------------------------------------------------
# Kernels
# ---------------------------------------------------------------------------
def _bn_fused_kernel(x_ref, gamma_ref, beta_ref, rm_ref, rv_ref,
                     out_ref, new_rm_ref, new_rv_ref):
    """Path A: one full-N feature stripe (N, TD); reduction over N in-block."""
    n = x_ref.shape[0]                                   # static
    xf = x_ref[...].astype(jnp.float32)                  # identity for f32 input
    mean = jnp.mean(xf, axis=0, keepdims=True)           # (1, TD)
    var_b = jnp.mean(jnp.square(xf - mean), axis=0, keepdims=True)

    scale = lax.rsqrt(var_b + EPS) * gamma_ref[...]      # (1, TD)
    shift = beta_ref[...] - mean * scale                 # (1, TD)
    # Fused epilogue reads x directly: two wide VPU passes, no live `centered`.
    out_ref[...] = (xf * scale + shift).astype(out_ref.dtype)

    # Running-stat update; PyTorch uses the *unbiased* batch variance.
    corr = float(n) / float(n - 1) if n > 1 else 1.0
    new_rm_ref[...] = (1.0 - MOMENTUM) * rm_ref[...] + MOMENTUM * mean
    new_rv_ref[...] = (1.0 - MOMENTUM) * rv_ref[...] + MOMENTUM * (var_b * corr)


def _bn_stats_kernel(x_ref, gamma_ref, beta_ref, rm_ref, rv_ref,
                     scale_ref, shift_ref, new_rm_ref, new_rv_ref,
                     sum_sc, sumsq_sc, *, n_total):
    """Path B pass 1: accumulate per-feature sum / sumsq over N blocks."""
    i = pl.program_id(1)                                 # N axis (arbitrary, last)
    tn = x_ref.shape[0]

    @pl.when(i == 0)
    def _init():
        sum_sc[...] = jnp.zeros_like(sum_sc)
        sumsq_sc[...] = jnp.zeros_like(sumsq_sc)

    # Pre-center on the running mean for numerical stability of E[x^2]-mean^2.
    c = rm_ref[...]                                      # (1, TD)
    xc = x_ref[...].astype(jnp.float32) - c              # (TN, TD)
    row = i * tn + lax.broadcasted_iota(jnp.int32, (tn, 1), 0)
    xc = jnp.where(row < n_total, xc, 0.0)               # mask rows of partial block
    sum_sc[...] += jnp.sum(xc, axis=0, keepdims=True)
    sumsq_sc[...] += jnp.sum(xc * xc, axis=0, keepdims=True)

    @pl.when(i == pl.num_programs(1) - 1)
    def _finalize():
        inv_n = 1.0 / float(n_total)                     # global N, not block N
        mu_c = sum_sc[...] * inv_n
        mean = mu_c + c
        var_b = jnp.maximum(sumsq_sc[...] * inv_n - mu_c * mu_c, 0.0)
        scale = lax.rsqrt(var_b + EPS) * gamma_ref[...]
        scale_ref[...] = scale
        shift_ref[...] = beta_ref[...] - mean * scale
        corr = float(n_total) / float(n_total - 1) if n_total > 1 else 1.0
        new_rm_ref[...] = (1.0 - MOMENTUM) * rm_ref[...] + MOMENTUM * mean
        new_rv_ref[...] = (1.0 - MOMENTUM) * rv_ref[...] + MOMENTUM * (var_b * corr)


def _bn_apply_kernel(x_ref, scale_ref, shift_ref, out_ref):
    """Path B pass 2: elementwise normalize (both grid axes parallel)."""
    out_ref[...] = (x_ref[...] * scale_ref[...] + shift_ref[...]).astype(out_ref.dtype)


# ---------------------------------------------------------------------------
# Tiling plans
# ---------------------------------------------------------------------------
def _plan_feature_stripes(n, d, itemsize, budget_bytes):
    """Path A plan: full-N feature stripes. None if a (N, 128) stripe won't fit."""
    # Per 128-lane group: x-in + out, double buffered, at native dtype, plus
    # ~2 transient f32 (N, TD) blocks inside the kernel body.
    per_cell = 4 * itemsize + 2 * 4
    bytes_per_group = _LANE * n * per_cell
    if bytes_per_group > budget_bytes:
        return None
    groups = pl.cdiv(d, _LANE)
    cap = max(1, budget_bytes // bytes_per_group)
    num_stripes = pl.cdiv(groups, cap)
    # Megacore (v7x): give both TensorCores stripes; on 1-TC parts the extra
    # grid step is ~0.35us — noise for sizes where this matters.
    if num_stripes > 1 and num_stripes % 2 == 1 and num_stripes + 1 <= groups:
        num_stripes += 1
    elif num_stripes == 1 and groups >= 2 and n * d >= (1 << 18):
        num_stripes = 2
    td = pl.cdiv(groups, num_stripes) * _LANE
    if td >= d:
        td = d                       # single stripe: block extent == array extent
        num_stripes = 1
    else:
        num_stripes = pl.cdiv(d, td)
    return td, num_stripes


def _plan_2d_tiles(n, d, itemsize, budget_bytes):
    """Path B plan (tall N): (TN, TD) tiles with TN a multiple of 8."""
    per_cell = 4 * itemsize + 2 * 4
    groups = min(pl.cdiv(d, _LANE), 8)                   # stripes up to 1024 lanes
    while groups > 1 and groups * _LANE * _SUBLANE * per_cell > budget_bytes:
        groups -= 1
    td = groups * _LANE
    if td >= d:
        td = d
    per_row = td * per_cell
    tn = (budget_bytes // per_row) // _SUBLANE * _SUBLANE
    tn = int(max(_SUBLANE, min(tn, pl.cdiv(n, _SUBLANE) * _SUBLANE)))
    return td, tn, pl.cdiv(d, td), pl.cdiv(n, tn)


# ---------------------------------------------------------------------------
# Pure-JAX fallback / reference
# ---------------------------------------------------------------------------
def _forward_jax(x, gamma, beta, running_mean, running_var):
    n = x.shape[0]
    xf = x.astype(jnp.float32)
    mean = jnp.mean(xf, axis=0)
    var_b = jnp.mean(jnp.square(xf - mean), axis=0)
    out = ((xf - mean) * lax.rsqrt(var_b + EPS) * gamma + beta).astype(x.dtype)
    corr = float(n) / float(n - 1) if n > 1 else 1.0
    new_rm = (1.0 - MOMENTUM) * running_mean.astype(jnp.float32) + MOMENTUM * mean
    new_rv = (1.0 - MOMENTUM) * running_var.astype(jnp.float32) + MOMENTUM * var_b * corr
    return out, new_rm, new_rv


# ---------------------------------------------------------------------------
# Public forward / normalize / denormalize
# ---------------------------------------------------------------------------
def normalizer_forward(x, gamma, beta, running_mean, running_var, *,
                       force_pallas=False, force_two_pass=False,
                       tile_budget_bytes=None):
    """NormalizerBase.forward: training-mode batch norm + running-stat update.

    Args:
      x:            (N, D) input
      gamma, beta:  (D,) affine parameters
      running_mean, running_var: (D,) running statistics (functional state)
    Returns:
      out (N, D), new_running_mean (D,), new_running_var (D,)
    """
    N, D = x.shape

    # Tiny inputs: pallas_call launch + grid overhead is pure loss.
    if not force_pallas and N * D < _PALLAS_MIN_ELEMS:
        return _forward_jax(x, gamma, beta, running_mean, running_var)

    vmem_limit, auto_budget = _vmem_plan()
    budget = int(tile_budget_bytes) if tile_budget_bytes is not None else auto_budget
    itemsize = jnp.dtype(x.dtype).itemsize

    # Tiny (1, D) parameter / state rows (negligible traffic). x itself is NOT
    # padded or copied — the trailing feature stripe is a partial block.
    gamma2 = gamma.reshape(1, D).astype(jnp.float32)
    beta2 = beta.reshape(1, D).astype(jnp.float32)
    rm2 = running_mean.reshape(1, D).astype(jnp.float32)
    rv2 = running_var.reshape(1, D).astype(jnp.float32)

    plan = None if force_two_pass else _plan_feature_stripes(N, D, itemsize, budget)

    # ---------------- Path A: fused single-pass, full-N feature stripes -----
    if plan is not None:
        td, num_stripes = plan
        row_spec = pl.BlockSpec((1, td), lambda j: (0, j))
        out, new_rm, new_rv = pl.pallas_call(
            _bn_fused_kernel,
            out_shape=(
                jax.ShapeDtypeStruct((N, D), x.dtype),
                jax.ShapeDtypeStruct((1, D), jnp.float32),
                jax.ShapeDtypeStruct((1, D), jnp.float32),
            ),
            grid_spec=pltpu.PrefetchScalarGridSpec(
                num_scalar_prefetch=0,
                grid=(num_stripes,),
                in_specs=[
                    pl.BlockSpec((N, td), lambda j: (0, j)),
                    row_spec, row_spec, row_spec, row_spec,
                ],
                out_specs=[
                    pl.BlockSpec((N, td), lambda j: (0, j)),
                    row_spec, row_spec,
                ],
            ),
            compiler_params=pltpu.CompilerParams(
                dimension_semantics=("parallel",),
                vmem_limit_bytes=vmem_limit,
            ),
            # running-stat in-place update: rm -> new_rm, rv -> new_rv
            input_output_aliases={3: 1, 4: 2},
            cost_estimate=pl.CostEstimate(
                flops=8 * N * D, transcendentals=D,
                bytes_accessed=2 * N * D * itemsize + 6 * D * 4),
        )(x, gamma2, beta2, rm2, rv2)
        return out, new_rm[0], new_rv[0]

    # ---------------- Path B: tall N -> two-pass (stats, then apply) --------
    td, tn, num_stripes, num_n = _plan_2d_tiles(N, D, itemsize, budget)
    row_spec2 = pl.BlockSpec((1, td), lambda j, i: (0, j))

    scale, shift, new_rm, new_rv = pl.pallas_call(
        functools.partial(_bn_stats_kernel, n_total=N),
        out_shape=(
            jax.ShapeDtypeStruct((1, D), jnp.float32),   # scale
            jax.ShapeDtypeStruct((1, D), jnp.float32),   # shift
            jax.ShapeDtypeStruct((1, D), jnp.float32),   # new running mean
            jax.ShapeDtypeStruct((1, D), jnp.float32),   # new running var
        ),
        grid_spec=pltpu.PrefetchScalarGridSpec(
            num_scalar_prefetch=0,
            grid=(num_stripes, num_n),                   # reduction (N) axis last
            in_specs=[
                pl.BlockSpec((tn, td), lambda j, i: (i, j)),
                row_spec2, row_spec2, row_spec2, row_spec2,
            ],
            out_specs=[row_spec2, row_spec2, row_spec2, row_spec2],
            scratch_shapes=[pltpu.VMEM((1, td), jnp.float32),
                            pltpu.VMEM((1, td), jnp.float32)],
        ),
        compiler_params=pltpu.CompilerParams(
            dimension_semantics=("parallel", "arbitrary"),
            vmem_limit_bytes=vmem_limit,
        ),
        input_output_aliases={3: 2, 4: 3},
        cost_estimate=pl.CostEstimate(
            flops=4 * N * D, transcendentals=D,
            bytes_accessed=N * D * itemsize + 8 * D * 4),
    )(x, gamma2, beta2, rm2, rv2)

    out = pl.pallas_call(
        _bn_apply_kernel,
        out_shape=jax.ShapeDtypeStruct((N, D), x.dtype),
        grid_spec=pltpu.PrefetchScalarGridSpec(
            num_scalar_prefetch=0,
            grid=(num_stripes, num_n),
            in_specs=[
                pl.BlockSpec((tn, td), lambda j, i: (i, j)),
                row_spec2, row_spec2,
            ],
            out_specs=pl.BlockSpec((tn, td), lambda j, i: (i, j)),
        ),
        compiler_params=pltpu.CompilerParams(
            dimension_semantics=("parallel", "parallel"),
            vmem_limit_bytes=vmem_limit,
        ),
        cost_estimate=pl.CostEstimate(
            flops=2 * N * D, transcendentals=0,
            bytes_accessed=2 * N * D * itemsize + 2 * D * 4),
    )(x, scale, shift)
    return out, new_rm[0], new_rv[0]


def normalizer_normalize(x, gamma, beta, running_mean, running_var):
    """NormalizerBase.normalize: eval-mode normalization (no stat update)."""
    inv_std = lax.rsqrt(running_var + EPS)
    return (x - running_mean) * inv_std * gamma + beta


def normalizer_denormalize(x, gamma, beta, running_mean, running_var):
    """NormalizerBase.denormalize: invert the eval-mode normalization."""
    std = jnp.sqrt(running_var + EPS)
    return (x - beta) / gamma * std + running_mean


# TODO(synk): _get_batch_norm / _get_batched_operation are abstract factory
# hooks with no compute; state (running stats) is threaded functionally here.


if __name__ == "__main__":
    key = jax.random.PRNGKey(0)
    N, D = 60, 300   # non-multiples of 8 / 128 -> partial trailing blocks exercised

    x = jax.random.normal(key, (N, D), dtype=jnp.float32) * 2.0 + 0.5

    # nn.BatchNorm1d(D) defaults: weight=1, bias=0, running_mean=0, running_var=1
    gamma = jnp.ones((D,), dtype=jnp.float32)
    beta = jnp.zeros((D,), dtype=jnp.float32)
    running_mean = jnp.zeros((D,), dtype=jnp.float32)
    running_var = jnp.ones((D,), dtype=jnp.float32)

    out_ref, rm_ref, rv_ref = _forward_jax(x, gamma, beta, running_mean, running_var)

    # Path A (fused single-pass) with a tiny budget so multiple 128-lane stripes
    # and the partial trailing stripe are exercised at this small size.
    fwd_a = jax.jit(functools.partial(normalizer_forward, force_pallas=True,
                                      tile_budget_bytes=256 * 1024))
    res_a = fwd_a(x, gamma, beta, running_mean, running_var)
    jax.block_until_ready(res_a)

    # Path B (two-pass tall-N tiling) forced explicitly, with a partial N block.
    fwd_b = jax.jit(functools.partial(normalizer_forward, force_pallas=True,
                                      force_two_pass=True,
                                      tile_budget_bytes=256 * 1024))
    res_b = fwd_b(x, gamma, beta, running_mean, running_var)
    jax.block_until_ready(res_b)

    # Default auto-sized plan (single stripe on this small problem).
    fwd_c = jax.jit(functools.partial(normalizer_forward, force_pallas=True))
    res_c = fwd_c(x, gamma, beta, running_mean, running_var)
    jax.block_until_ready(res_c)

    for out, new_rm, new_rv in (res_a, res_b, res_c):
        assert jnp.allclose(out, out_ref, atol=1e-4, rtol=1e-4)
        assert jnp.allclose(new_rm, rm_ref, atol=1e-5, rtol=1e-5)
        assert jnp.allclose(new_rv, rv_ref, atol=1e-4, rtol=1e-4)

    # Round-trip check of normalize/denormalize (eval-mode, no update).
    out, new_rm, new_rv = res_a
    xn = normalizer_normalize(x, gamma, beta, new_rm, new_rv)
    xd = normalizer_denormalize(xn, gamma, beta, new_rm, new_rv)
    assert jnp.allclose(xd, x, atol=1e-4, rtol=1e-4)

    print("KERNEL_OK")
</pallas_src>

<mosaic_0001>
module attributes {stable_mosaic.version = 11 : i64} {
  func.func @_bn_fused_kernel(%arg0: i32, %arg1: memref<60x128xf32, #tpu.memory_space<vmem>>, %arg2: memref<1x128xf32, #tpu.memory_space<vmem>>, %arg3: memref<1x128xf32, #tpu.memory_space<vmem>>, %arg4: memref<1x128xf32, #tpu.memory_space<vmem>>, %arg5: memref<1x128xf32, #tpu.memory_space<vmem>>, %arg6: memref<60x128xf32, #tpu.memory_space<vmem>>, %arg7: memref<1x128xf32, #tpu.memory_space<vmem>>, %arg8: memref<1x128xf32, #tpu.memory_space<vmem>>) attributes {dimension_semantics = [#tpu.dimension_semantics<parallel>], iteration_bounds = array<i64: 3>, scalar_prefetch = 0 : i64, scratch_operands = 0 : i64, tpu.core_type = #tpu.core_type<tc>, window_params = [{transform_indices = @transform_0, window_bounds = array<i64: 60, 128>}, {transform_indices = @transform_1, window_bounds = array<i64: 1, 128>}, {transform_indices = @transform_2, window_bounds = array<i64: 1, 128>}, {transform_indices = @transform_3, window_bounds = array<i64: 1, 128>}, {transform_indices = @transform_4, window_bounds = array<i64: 1, 128>}, {transform_indices = @transform_5, window_bounds = array<i64: 60, 128>}, {transform_indices = @transform_6, window_bounds = array<i64: 1, 128>}, {transform_indices = @transform_7, window_bounds = array<i64: 1, 128>}]} {
    %c0 = arith.constant 0 : index
    %c0_0 = arith.constant 0 : index
    %0 = vector.load %arg1[%c0, %c0_0] : memref<60x128xf32, #tpu.memory_space<vmem>>, vector<60x128xf32>
    %cst = arith.constant dense<0.000000e+00> : vector<128xf32>
    %1 = vector.multi_reduction <add>, %0, %cst [0] : vector<60x128xf32> to vector<128xf32>
    %2 = vector.shape_cast %1 : vector<128xf32> to vector<1x128xf32>
    %cst_1 = arith.constant 6.000000e+01 : f32
    %3 = vector.broadcast %cst_1 : f32 to vector<1x128xf32>
    %4 = arith.divf %2, %3 : vector<1x128xf32>
    %5 = vector.broadcast %4 : vector<1x128xf32> to vector<60x128xf32>
    %6 = arith.subf %0, %5 : vector<60x128xf32>
    %7 = arith.mulf %6, %6 : vector<60x128xf32>
    %cst_2 = arith.constant dense<0.000000e+00> : vector<128xf32>
    %8 = vector.multi_reduction <add>, %7, %cst_2 [0] : vector<60x128xf32> to vector<128xf32>
    %9 = vector.shape_cast %8 : vector<128xf32> to vector<1x128xf32>
    %cst_3 = arith.constant 6.000000e+01 : f32
    %10 = vector.broadcast %cst_3 : f32 to vector<1x128xf32>
    %11 = arith.divf %9, %10 : vector<1x128xf32>
    %cst_4 = arith.constant 9.99999974E-6 : f32
    %12 = vector.broadcast %cst_4 : f32 to vector<1x128xf32>
    %13 = arith.addf %11, %12 : vector<1x128xf32>
    %14 = math.rsqrt %13 : vector<1x128xf32>
    %c0_5 = arith.constant 0 : index
    %c0_6 = arith.constant 0 : index
    %15 = vector.load %arg2[%c0_5, %c0_6] : memref<1x128xf32, #tpu.memory_space<vmem>>, vector<1x128xf32>
    %16 = arith.mulf %14, %15 : vector<1x128xf32>
    %c0_7 = arith.constant 0 : index
    %c0_8 = arith.constant 0 : index
    %17 = vector.load %arg3[%c0_7, %c0_8] : memref<1x128xf32, #tpu.memory_space<vmem>>, vector<1x128xf32>
    %18 = arith.mulf %4, %16 : vector<1x128xf32>
    %19 = arith.subf %17, %18 : vector<1x128xf32>
    %20 = vector.broadcast %16 : vector<1x128xf32> to vector<60x128xf32>
    %21 = arith.mulf %0, %20 : vector<60x128xf32>
    %22 = vector.broadcast %19 : vector<1x128xf32> to vector<60x128xf32>
    %23 = arith.addf %21, %22 : vector<60x128xf32>
    %c0_9 = arith.constant 0 : index
    %c0_10 = arith.constant 0 : index
    %24 = vector.load %arg6[%c0_9, %c0_10] : memref<60x128xf32, #tpu.memory_space<vmem>>, vector<60x128xf32>
    tpu.vector_store %arg6[%c0_9, %c0_10], %23 {strides = array<i32>} : memref<60x128xf32, #tpu.memory_space<vmem>>, vector<60x128xf32>,
    %c0_11 = arith.constant 0 : index
    %c0_12 = arith.constant 0 : index
    %25 = vector.load %arg4[%c0_11, %c0_12] : memref<1x128xf32, #tpu.memory_space<vmem>>, vector<1x128xf32>
    %cst_13 = arith.constant 0.899999976 : f32
    %26 = vector.broadcast %cst_13 : f32 to vector<1x128xf32>
    %27 = arith.mulf %26, %25 : vector<1x128xf32>
    %cst_14 = arith.constant 1.000000e-01 : f32
    %28 = vector.broadcast %cst_14 : f32 to vector<1x128xf32>
    %29 = arith.mulf %28, %4 : vector<1x128xf32>
    %30 = arith.addf %27, %29 : vector<1x128xf32>
    %c0_15 = arith.constant 0 : index
    %c0_16 = arith.constant 0 : index
    %31 = vector.load %arg7[%c0_15, %c0_16] : memref<1x128xf32, #tpu.memory_space<vmem>>, vector<1x128xf32>
    tpu.vector_store %arg7[%c0_15, %c0_16], %30 {strides = array<i32>} : memref<1x128xf32, #tpu.memory_space<vmem>>, vector<1x128xf32>,
    %c0_17 = arith.constant 0 : index
    %c0_18 = arith.constant 0 : index
    %32 = vector.load %arg5[%c0_17, %c0_18] : memref<1x128xf32, #tpu.memory_space<vmem>>, vector<1x128xf32>
    %cst_19 = arith.constant 0.899999976 : f32
    %33 = vector.broadcast %cst_19 : f32 to vector<1x128xf32>
    %34 = arith.mulf %33, %32 : vector<1x128xf32>
    %cst_20 = arith.constant 1.01694918 : f32
    %35 = vector.broadcast %cst_20 : f32 to vector<1x128xf32>
    %36 = arith.mulf %11, %35 : vector<1x128xf32>
    %cst_21 = arith.constant 1.000000e-01 : f32
    %37 = vector.broadcast %cst_21 : f32 to vector<1x128xf32>
    %38 = arith.mulf %37, %36 : vector<1x128xf32>
    %39 = arith.addf %34, %38 : vector<1x128xf32>
    %c0_22 = arith.constant 0 : index
    %c0_23 = arith.constant 0 : index
    %40 = vector.load %arg8[%c0_22, %c0_23] : memref<1x128xf32, #tpu.memory_space<vmem>>, vector<1x128xf32>
    tpu.vector_store %arg8[%c0_22, %c0_23], %39 {strides = array<i32>} : memref<1x128xf32, #tpu.memory_space<vmem>>, vector<1x128xf32>,
    return
  }
  func.func @transform_0(%arg0: i32) -> (i32, i32) {
    %c0_i32 = arith.constant 0 : i32
    %c0_i32_0 = arith.constant 0 : i32
    return %c0_i32, %arg0 : i32, i32
  }
  func.func @transform_1(%arg0: i32) -> (i32, i32) {
    %c0_i32 = arith.constant 0 : i32
    %c0_i32_0 = arith.constant 0 : i32
    return %c0_i32, %arg0 : i32, i32
  }
  func.func @transform_2(%arg0: i32) -> (i32, i32) {
    %c0_i32 = arith.constant 0 : i32
    %c0_i32_0 = arith.constant 0 : i32
    return %c0_i32, %arg0 : i32, i32
  }
  func.func @transform_3(%arg0: i32) -> (i32, i32) {
    %c0_i32 = arith.constant 0 : i32
    %c0_i32_0 = arith.constant 0 : i32
    return %c0_i32, %arg0 : i32, i32
  }
  func.func @transform_4(%arg0: i32) -> (i32, i32) {
    %c0_i32 = arith.constant 0 : i32
    %c0_i32_0 = arith.constant 0 : i32
    return %c0_i32, %arg0 : i32, i32
  }
  func.func @transform_5(%arg0: i32) -> (i32, i32) {
    %c0_i32 = arith.constant 0 : i32
    %c0_i32_0 = arith.constant 0 : i32
    return %c0_i32, %arg0 : i32, i32
  }
  func.func @transform_6(%arg0: i32) -> (i32, i32) {
    %c0_i32 = arith.constant 0 : i32
    %c0_i32_0 = arith.constant 0 : i32
    return %c0_i32, %arg0 : i32, i32
  }
  func.func @transform_7(%arg0: i32) -> (i32, i32) {
    %c0_i32 = arith.constant 0 : i32
    %c0_i32_0 = arith.constant 0 : i32
    return %c0_i32, %arg0 : i32, i32
  }
}

</mosaic_0001>

<llo_original>
// kernel: normalizer_forward.1
$region0: #{normalizer_forward.1}
  #allocation0 [shape = 'u32[]', space=smem, size = 0x4, offset = 0x4, fixed_abs, tag = 'smem constant byte address 0x4 - core index']
  #allocation1 [shape = 'u32[144,128]{1,0:T(1,128)}', space=vmem, size = 0x12000, scoped, tag = 'internal scratch']
  %s0 = inlined_call_operand.hbm [shape: f32[60,300], index: 0, kind: input, shape index: {}]
  %s1 = inlined_call_operand.vmem [shape: f32[1,300], index: 1, kind: input, shape index: {}]
  %s2 = inlined_call_operand.vmem [shape: f32[1,300], index: 2, kind: input, shape index: {}]
  %s3 = inlined_call_operand.vmem [shape: f32[1,300], index: 3, kind: input, shape index: {}, may-alias: {3,6}]
  %s4 = inlined_call_operand.vmem [shape: f32[1,300], index: 4, kind: input, shape index: {}, may-alias: {4,7}]
  %s5 = inlined_call_operand.hbm [shape: f32[60,300], index: 5, kind: output, shape index: {0}]
  %s6 = inlined_call_operand.vmem [shape: f32[1,300], index: 6, kind: output, shape index: {1}, may-alias: {3,6}]
  %s7 = inlined_call_operand.vmem [shape: f32[1,300], index: 7, kind: output, shape index: {2}, may-alias: {4,7}]
  %8 = xla_tuple %s5, %s6, %s7
  %s9 = sld [smem:[#allocation0]]
  $region73: #{normalizer_forward.1} parent=0
    _
  %s11 = ssub.s32 1, %s9
  %s12 = scalar_select 0, %s11, %s9
  $region1: #{normalizer_forward.1} parent=0
    #allocation2 [shape = 'u8[65536]{0}', space=vmem, size = 0x10000, scoped, tag = 'input window, operand 0']
    #allocation3 [shape = 's32[2]{0}', space=sflag, size = 0x8, scoped, tag = 'scoped memory for normalizer_forward.1']
    #allocation4 [shape = 's32[2]{0}', space=sflag, size = 0x8, scoped, tag = 'scoped memory for normalizer_forward.1']
    #allocation5 [shape = 'u8[65536]{0}', space=vmem, size = 0x10000, scoped, tag = 'output window, operand 0']
    %13 = vsyncpa [#allocation3], 0
    %s14 = scalar_lea.sflag [#allocation3], 1
    %15 = vsyncpa %s14, 0
    %16 = vsyncpa [#allocation4], 0
    %s17 = scalar_lea.sflag [#allocation4], 1
    %18 = vsyncpa %s17, 0
    loop: start=0, step=1, limit=5
    $region2: #{normalizer_forward.1} parent=1 // loop_pre_header
      _
    $region3: #{normalizer_forward.1} parent=1 // loop_header
      %s20 = sphi 0, %s24
      %p21 = scmp.ge.s32.totalorder %s20, 5
      %s30 = sphi 0, %s32
      %s33 = sphi 0, %s30
      %s34 = sphi 0, %s33
      %s50 = sphi 0, %s34
      %s56 = sphi 0, %s58
      %s59 = sphi 0, %s56
      %s60 = sphi 0, %s59
      %s76 = sphi 0, %s60
      %s82 = sphi 0, %s84
      %s85 = sphi 0, %s82
      %s86 = sphi 0, %s85
      %s102 = sphi 0, %s86
      %s108 = sphi 0, %s110
      %s111 = sphi 0, %s108
      %s112 = sphi 0, %s111
      %s128 = sphi 0, %s112
      %s134 = sphi 0, %s136
      %s137 = sphi 0, %s134
      %s138 = sphi 0, %s137
      %s154 = sphi 0, %s138
      %s160 = sphi 0, %s162
      %s163 = sphi 0, %s160
      %s164 = sphi 0, %s163
      %s180 = sphi 0, %s164
      %s186 = sphi 0, %s188
      %s189 = sphi 0, %s186
      %s190 = sphi 0, %s189
      %s206 = sphi 0, %s190
      %s212 = sphi 0, %s214
      %s215 = sphi 0, %s212
      %s216 = sphi 0, %s215
      %s232 = sphi 0, %s216
    $region4: #{normalizer_forward.1} parent=1 // loop_header_branch
      %23 = sbr.rel (%p21) target = $region8
    $region5: #{normalizer_forward.1} parent=1 // loop_body
      %s25 = ssub.s32 %s20, 1
      %s26 = ssub.s32 %s20, 2
      %s27 = sadd.s32 %s20, 1
      %s28 = ssub.s32 %s20, %s27
      %p29 = scmp.eq.s32.totalorder %s28, 0
      %s31 = sadd.s32 %s30, 1
      %s32 = scalar_select %p29, %s30, %s31
      %p35 = pneg %p29
      %p36 = scmp.eq.s32.totalorder %s20, 2
      %p37 = por %p35, %p36
      %p38 = scmp.ne.s32.totalorder %s30, %s33
      %p39 = scmp.eq.s32.totalorder %s20, 0
      %p40 = por %p38, %p39
      %p41 = scmp.ne.s32.totalorder %s30, %s33
      %p42 = scmp.eq.s32.totalorder %s25, 2
      %p43 = por %p41, %p42
      %p44 = scmp.ne.s32.totalorder %s33, %s34
      %p45 = scmp.eq.s32.totalorder %s25, 0
      %p46 = por %p44, %p45
      %p47 = scmp.ne.s32.totalorder %s33, %s34
      %p48 = scmp.eq.s32.totalorder %s26, 2
      %p49 = por %p47, %p48
      %p51 = scmp.ne.s32.totalorder %s34, %s50
      %p52 = scmp.eq.s32.totalorder %s26, 0
      %p53 = por %p51, %p52
      %s54 = ssub.s32 %s20, %s27
      %p55 = scmp.eq.s32.totalorder %s54, 0
      %s57 = sadd.s32 %s56, 1
      %s58 = scalar_select %p55, %s56, %s57
      %p61 = pneg %p55
      %p62 = scmp.eq.s32.totalorder %s20, 2
      %p63 = por %p61, %p62
      %p64 = scmp.ne.s32.totalorder %s56, %s59
      %p65 = scmp.eq.s32.totalorder %s20, 0
      %p66 = por %p64, %p65
      %p67 = scmp.ne.s32.totalorder %s56, %s59
      %p68 = scmp.eq.s32.totalorder %s25, 2
      %p69 = por %p67, %p68
      %p70 = scmp.ne.s32.totalorder %s59, %s60
      %p71 = scmp.eq.s32.totalorder %s25, 0
      %p72 = por %p70, %p71
      %p73 = scmp.ne.s32.totalorder %s59, %s60
      %p74 = scmp.eq.s32.totalorder %s26, 2
      %p75 = por %p73, %p74
      %p77 = scmp.ne.s32.totalorder %s60, %s76
      %p78 = scmp.eq.s32.totalorder %s26, 0
      %p79 = por %p77, %p78
      %s80 = ssub.s32 %s20, %s27
      %p81 = scmp.eq.s32.totalorder %s80, 0
      %s83 = sadd.s32 %s82, 1
      %s84 = scalar_select %p81, %s82, %s83
      %p87 = pneg %p81
      %p88 = scmp.eq.s32.totalorder %s20, 2
      %p89 = por %p87, %p88
      %p90 = scmp.ne.s32.totalorder %s82, %s85
      %p91 = scmp.eq.s32.totalorder %s20, 0
      %p92 = por %p90, %p91
      %p93 = scmp.ne.s32.totalorder %s82, %s85
      %p94 = scmp.eq.s32.totalorder %s25, 2
      %p95 = por %p93, %p94
      %p96 = scmp.ne.s32.totalorder %s85, %s86
      %p97 = scmp.eq.s32.totalorder %s25, 0
      %p98 = por %p96, %p97
      %p99 = scmp.ne.s32.totalorder %s85, %s86
      %p100 = scmp.eq.s32.totalorder %s26, 2
      %p101 = por %p99, %p100
      %p103 = scmp.ne.s32.totalorder %s86, %s102
      %p104 = scmp.eq.s32.totalorder %s26, 0
      %p105 = por %p103, %p104
      %s106 = ssub.s32 %s20, %s27
      %p107 = scmp.eq.s32.totalorder %s106, 0
      %s109 = sadd.s32 %s108, 1
      %s110 = scalar_select %p107, %s108, %s109
      %p113 = pneg %p107
      %p114 = scmp.eq.s32.totalorder %s20, 2
      %p115 = por %p113, %p114
      %p116 = scmp.ne.s32.totalorder %s108, %s111
      %p117 = scmp.eq.s32.totalorder %s20, 0
      %p118 = por %p116, %p117
      %p119 = scmp.ne.s32.totalorder %s108, %s111
      %p120 = scmp.eq.s32.totalorder %s25, 2
      %p121 = por %p119, %p120
      %p122 = scmp.ne.s32.totalorder %s111, %s112
      %p123 = scmp.eq.s32.totalorder %s25, 0
      %p124 = por %p122, %p123
      %p125 = scmp.ne.s32.totalorder %s111, %s112
      %p126 = scmp.eq.s32.totalorder %s26, 2
      %p127 = por %p125, %p126
      %p129 = scmp.ne.s32.totalorder %s112, %s128
      %p130 = scmp.eq.s32.totalorder %s26, 0
      %p131 = por %p129, %p130
      %s132 = ssub.s32 %s20, %s27
      %p133 = scmp.eq.s32.totalorder %s132, 0
      %s135 = sadd.s32 %s134, 1
      %s136 = scalar_select %p133, %s134, %s135
      %p139 = pneg %p133
      %p140 = scmp.eq.s32.totalorder %s20, 2
      %p141 = por %p139, %p140
      %p142 = scmp.ne.s32.totalorder %s134, %s137
      %p143 = scmp.eq.s32.totalorder %s20, 0
      %p144 = por %p142, %p143
      %p145 = scmp.ne.s32.totalorder %s134, %s137
      %p146 = scmp.eq.s32.totalorder %s25, 2
      %p147 = por %p145, %p146
      %p148 = scmp.ne.s32.totalorder %s137, %s138
      %p149 = scmp.eq.s32.totalorder %s25, 0
      %p150 = por %p148, %p149
      %p151 = scmp.ne.s32.totalorder %s137, %s138
      %p152 = scmp.eq.s32.totalorder %s26, 2
      %p153 = por %p151, %p152
      %p155 = scmp.ne.s32.totalorder %s138, %s154
      %p156 = scmp.eq.s32.totalorder %s26, 0
      %p157 = por %p155, %p156
      %s158 = ssub.s32 %s20, %s27
      %p159 = scmp.eq.s32.totalorder %s158, 0
      %s161 = sadd.s32 %s160, 1
      %s162 = scalar_select %p159, %s160, %s161
      %p165 = pneg %p159
      %p166 = scmp.eq.s32.totalorder %s20, 2
      %p167 = por %p165, %p166
      %p168 = scmp.ne.s32.totalorder %s160, %s163
      %p169 = scmp.eq.s32.totalorder %s20, 0
      %p170 = por %p168, %p169
      %p171 = scmp.ne.s32.totalorder %s160, %s163
      %p172 = scmp.eq.s32.totalorder %s25, 2
      %p173 = por %p171, %p172
      %p174 = scmp.ne.s32.totalorder %s163, %s164
      %p175 = scmp.eq.s32.totalorder %s25, 0
      %p176 = por %p174, %p175
      %p177 = scmp.ne.s32.totalorder %s163, %s164
      %p178 = scmp.eq.s32.totalorder %s26, 2
      %p179 = por %p177, %p178
      %p181 = scmp.ne.s32.totalorder %s164, %s180
      %p182 = scmp.eq.s32.totalorder %s26, 0
      %p183 = por %p181, %p182
      %s184 = ssub.s32 %s20, %s27
      %p185 = scmp.eq.s32.totalorder %s184, 0
      %s187 = sadd.s32 %s186, 1
      %s188 = scalar_select %p185, %s186, %s187
      %p191 = pneg %p185
      %p192 = scmp.eq.s32.totalorder %s20, 2
      %p193 = por %p191, %p192
      %p194 = scmp.ne.s32.totalorder %s186, %s189
      %p195 = scmp.eq.s32.totalorder %s20, 0
      %p196 = por %p194, %p195
      %p197 = scmp.ne.s32.totalorder %s186, %s189
      %p198 = scmp.eq.s32.totalorder %s25, 2
      %p199 = por %p197, %p198
      %p200 = scmp.ne.s32.totalorder %s189, %s190
      %p201 = scmp.eq.s32.totalorder %s25, 0
      %p202 = por %p200, %p201
      %p203 = scmp.ne.s32.totalorder %s189, %s190
      %p204 = scmp.eq.s32.totalorder %s26, 2
      %p205 = por %p203, %p204
      %p207 = scmp.ne.s32.totalorder %s190, %s206
      %p208 = scmp.eq.s32.totalorder %s26, 0
      %p209 = por %p207, %p208
      %s210 = ssub.s32 %s20, %s27
      %p211 = scmp.eq.s32.totalorder %s210, 0
      %s213 = sadd.s32 %s212, 1
      %s214 = scalar_select %p211, %s212, %s213
      %p217 = pneg %p211
      %p218 = scmp.eq.s32.totalorder %s20, 2
      %p219 = por %p217, %p218
      %p220 = scmp.ne.s32.totalorder %s212, %s215
      %p221 = scmp.eq.s32.totalorder %s20, 0
      %p222 = por %p220, %p221
      %p223 = scmp.ne.s32.totalorder %s212, %s215
      %p224 = scmp.eq.s32.totalorder %s25, 2
      %p225 = por %p223, %p224
      %p226 = scmp.ne.s32.totalorder %s215, %s216
      %p227 = scmp.eq.s32.totalorder %s25, 0
      %p228 = por %p226, %p227
      %p229 = scmp.ne.s32.totalorder %s215, %s216
      %p230 = scmp.eq.s32.totalorder %s26, 2
      %p231 = por %p229, %p230
      %p233 = scmp.ne.s32.totalorder %s216, %s232
      %p234 = scmp.eq.s32.totalorder %s26, 0
      %p235 = por %p233, %p234
      %p236 = scmp.le.s32.totalorder 1, %s20
      %p237 = scmp.lt.s32.totalorder %s20, 4
      %p238 = pnand %p236, %p237
      %p239 = pneg %p238
      // Predicated region
      $region9: #{normalizer_forward.1} parent=5 // pred_check
        _
      $region10: #{normalizer_forward.1} parent=5 // pred_check_branch
        %241 = sbr.rel (%p238) target = $region12
      $region11: #{normalizer_forward.1} parent=5 // pred_region
        %s242 = ssub.s32 %s20, 1
      $region12: #{normalizer_forward.1} parent=5 // pred_fallthru
        _
      %p243 = scmp.lt.s32.totalorder %s20, 3
      // Predicated region
      $region13: #{normalizer_forward.1} parent=5 // pred_check
        %p244 = pneg %p243
      $region14: #{normalizer_forward.1} parent=5 // pred_check_branch
        %246 = sbr.rel (%p244) target = $region16
      $region15: #{normalizer_forward.1} parent=5 // pred_region
        // Predicated region
        $region17: #{normalizer_forward.1} parent=15 // pred_check
          %p247 = pneg %p40
        $region18: #{normalizer_forward.1} parent=15 // pred_check_branch
          %249 = sbr.rel (%p247) target = $region20
        $region19: #{normalizer_forward.1} parent=15 // pred_region
          %s250 = sand.u32 %s30, 1
          %s251 = scalar_lea.sflag [#allocation3], %s250
          %s252 = sand.u32 %s30, 1
          %s253 = smul.addr %s252, 64
          %s254 = scalar_lea.vmem [#allocation2], %s253
          %s256 = ssub.s32 1024, 1024
          %257 = vsyncadd %s251, %s256
          %s258 = smul.addr %s20, 128
          %s259 = scalar_lea.hbm %s0, %s258
          %s260 = sshll.u32 %s254, 4
          %s261 = int_to_ptr.vmem [resolvable:$true] %s260
          %266 = dma.hbm_to_vmem [thread:$0]  %s259, 1024, %s261, %s251, 384, 128, 8
        $region20: #{normalizer_forward.1} parent=15 // pred_fallthru
          _
        // Predicated region
        $region21: #{normalizer_forward.1} parent=15 // pred_check
          %p267 = pneg %p66
        $region22: #{normalizer_forward.1} parent=15 // pred_check_branch
          %269 = sbr.rel (%p267) target = $region24
        $region23: #{normalizer_forward.1} parent=15 // pred_region
          %p270 = scmp.lt.s32.totalorder %s20, 2
          %s271 = scalar_select %p270, %s20, 2
          %s272 = scalar_lea.vmem %s1, %s271
        $region24: #{normalizer_forward.1} parent=15 // pred_fallthru
          _
        // Predicated region
        $region25: #{normalizer_forward.1} parent=15 // pred_check
          %p273 = pneg %p92
        $region26: #{normalizer_forward.1} parent=15 // pred_check_branch
          %275 = sbr.rel (%p273) target = $region28
        $region27: #{normalizer_forward.1} parent=15 // pred_region
          %p276 = scmp.lt.s32.totalorder %s20, 2
          %s277 = scalar_select %p276, %s20, 2
          %s278 = scalar_lea.vmem %s2, %s277
        $region28: #{normalizer_forward.1} parent=15 // pred_fallthru
          _
        // Predicated region
        $region29: #{normalizer_forward.1} parent=15 // pred_check
          %p279 = pneg %p118
        $region30: #{normalizer_forward.1} parent=15 // pred_check_branch
          %281 = sbr.rel (%p279) target = $region32
        $region31: #{normalizer_forward.1} parent=15 // pred_region
          %p282 = scmp.lt.s32.totalorder %s20, 2
          %s283 = scalar_select %p282, %s20, 2
          %s284 = scalar_lea.vmem %s3, %s283
        $region32: #{normalizer_forward.1} parent=15 // pred_fallthru
          _
        // Predicated region
        $region33: #{normalizer_forward.1} parent=15 // pred_check
          %p285 = pneg %p144
        $region34: #{normalizer_forward.1} parent=15 // pred_check_branch
          %287 = sbr.rel (%p285) target = $region36
        $region35: #{normalizer_forward.1} parent=15 // pred_region
          %p288 = scmp.lt.s32.totalorder %s20, 2
          %s289 = scalar_select %p288, %s20, 2
          %s290 = scalar_lea.vmem %s4, %s289
        $region36: #{normalizer_forward.1} parent=15 // pred_fallthru
          _
      $region16: #{normalizer_forward.1} parent=5 // pred_fallthru
        _
      %p291 = scmp.le.s32.totalorder 1, %s20
      %p292 = scmp.lt.s32.totalorder %s20, 4
      %p293 = pnand %p291, %p292
      %p294 = pneg %p293
      // Predicated region
      $region37: #{normalizer_forward.1} parent=5 // pred_check
        _
      $region38: #{normalizer_forward.1} parent=5 // pred_check_branch
        %296 = sbr.rel (%p293) target = $region40
      $region39: #{normalizer_forward.1} parent=5 // pred_region
        %s297 = ssub.s32 %s20, 1
        %s298 = sand.u32 %s33, 1
        %s299 = scalar_lea.sflag [#allocation3], %s298
        %s300 = sand.u32 %s33, 1
        %s301 = smul.addr %s300, 64
        %s302 = scalar_lea.vmem [#allocation2], %s301
        // Predicated region
        $region41: #{normalizer_forward.1} parent=39 // pred_check
          %p303 = pneg %p46
        $region42: #{normalizer_forward.1} parent=39 // pred_check_branch
          %305 = sbr.rel (%p303) target = $region44
        $region43: #{normalizer_forward.1} parent=39 // pred_region
          %306 = dma.done %s299, 1024
        $region44: #{normalizer_forward.1} parent=39 // pred_fallthru
          _
        %s307 = sand.u32 %s33, 1
        %s308 = scalar_lea.sflag [#allocation3], %s307
        %s309 = sand.u32 %s33, 1
        %s310 = smul.addr %s309, 64
        %s311 = scalar_lea.vmem [#allocation2], %s310
        %p312 = pneg %p46
        %p313 = pneg %p43
        %p314 = scmp.lt.s32.totalorder %s25, 2
        %s315 = scalar_select %p314, %s25, 2
        %s316 = scalar_lea.vmem %s1, %s315
        %p317 = pneg %p72
        %p318 = pneg %p69
        %p319 = scmp.lt.s32.totalorder %s25, 2
        %s320 = scalar_select %p319, %s25, 2
        %s321 = scalar_lea.vmem %s2, %s320
        %p322 = pneg %p98
        %p323 = pneg %p95
        %p324 = scmp.lt.s32.totalorder %s25, 2
        %s325 = scalar_select %p324, %s25, 2
        %s326 = scalar_lea.vmem %s3, %s325
        %p327 = pneg %p124
        %p328 = pneg %p121
        %p329 = scmp.lt.s32.totalorder %s25, 2
        %s330 = scalar_select %p329, %s25, 2
        %s331 = scalar_lea.vmem %s4, %s330
        %p332 = pneg %p150
        %p333 = pneg %p147
        %p334 = pneg %p176
        %p335 = pneg %p173
        %s336 = sand.u32 %s163, 1
        %s337 = scalar_lea.sflag [#allocation4], %s336
        %s338 = sand.u32 %s163, 1
        %s339 = smul.addr %s338, 64
        %s340 = scalar_lea.vmem [#allocation5], %s339
        %p341 = pneg %p202
        %p342 = pneg %p199
        %p343 = scmp.lt.s32.totalorder %s25, 2
        %s344 = scalar_select %p343, %s25, 2
        %s345 = scalar_lea.vmem %s6, %s344
        %p346 = pneg %p228
        %p347 = pneg %p225
        %p348 = scmp.lt.s32.totalorder %s25, 2
        %s349 = scalar_select %p348, %s25, 2
        %s350 = scalar_lea.vmem %s7, %s349
        %p351 = scmp.lt.s32.totalorder %s25, 2
        %s352 = scalar_select %p351, %s25, 2
        %s353 = scalar_lea.vmem %s1, %s352
        %p354 = scmp.lt.s32.totalorder %s25, 2
        %s355 = scalar_select %p354, %s25, 2
        %s356 = scalar_lea.vmem %s2, %s355
        %p357 = scmp.lt.s32.totalorder %s25, 2
        %s358 = scalar_select %p357, %s25, 2
        %s359 = scalar_lea.vmem %s3, %s358
        %p360 = scmp.lt.s32.totalorder %s25, 2
        %s361 = scalar_select %p360, %s25, 2
        %s362 = scalar_lea.vmem %s4, %s361
        %p363 = scmp.lt.s32.totalorder %s25, 2
        %s364 = scalar_select %p363, %s25, 2
        %s365 = scalar_lea.vmem %s6, %s364
        %p366 = scmp.lt.s32.totalorder %s25, 2
        %s367 = scalar_select %p366, %s25, 2
        %s368 = scalar_lea.vmem %s7, %s367
        %v369 = vld [vmem:[%s302] sm:$0xff]
        %v370 = vld [vmem:[%s302 + $0x8] sm:$0xff]
        %v371 = vld [vmem:[%s302 + $0x10] sm:$0xff]
        %v372 = vld [vmem:[%s302 + $0x18] sm:$0xff]
        %v373 = vld [vmem:[%s302 + $0x20] sm:$0xff]
        %v374 = vld [vmem:[%s302 + $0x28] sm:$0xff]
        %v375 = vld [vmem:[%s302 + $0x30] sm:$0xff]
        %v376 = vld [vmem:[%s302 + $0x38] sm:$0xf]
        %v377 = vadd.f32 %v369, %v370
        %v378 = vadd.f32 %v377, %v371
        %v379 = vadd.f32 %v378, %v372
        %v380 = vadd.f32 %v379, %v373
        %v381 = vadd.f32 %v380, %v374
        %v382 = vadd.f32 %v381, %v375
        %vm383 = vcmask 1043456
        %v384 = vsel %vm383, %v376, 0.0
        %v385 = vadd.f32 %v382, %v384
        %v386 = vrot.slane %v385, 4
        %v387 = vadd.f32 %v385, %v386
        %v388 = vrot.slane %v387, 2
        %v389 = vadd.f32 %v387, %v388
        %v390 = vrot.slane %v389, 1
        %v391 = vadd.f32 %v389, %v390
        %v392 = vrcp.pop 60.0
        %v393 = vmul.f32 %v391, %v392
        %v394 = vsub.f32 %v369, %v393
        %v395 = vsub.f32 %v370, %v393
        %v396 = vsub.f32 %v371, %v393
        %v397 = vsub.f32 %v372, %v393
        %v398 = vsub.f32 %v373, %v393
        %v399 = vsub.f32 %v374, %v393
        %v400 = vsub.f32 %v375, %v393
        %v401 = vsub.f32 %v376, %v393
        %v402 = vmul.f32 %v394, %v394
        %v403 = vmul.f32 %v395, %v395
        %v404 = vmul.f32 %v396, %v396
        %v405 = vmul.f32 %v397, %v397
        %v406 = vmul.f32 %v398, %v398
        %v407 = vmul.f32 %v399, %v399
        %v408 = vmul.f32 %v400, %v400
        %v409 = vmul.f32 %v401, %v401
        %v410 = vadd.f32 %v402, %v403
        %v411 = vadd.f32 %v410, %v404
        %v412 = vadd.f32 %v411, %v405
        %v413 = vadd.f32 %v412, %v406
        %v414 = vadd.f32 %v413, %v407
        %v415 = vadd.f32 %v414, %v408
        %v416 = vsel %vm383, %v409, 0.0
        %v417 = vadd.f32 %v415, %v416
        %v418 = vrot.slane %v417, 4
        %v419 = vadd.f32 %v417, %v418
        %v420 = vrot.slane %v419, 2
        %v421 = vadd.f32 %v419, %v420
        %v422 = vrot.slane %v421, 1
        %v423 = vadd.f32 %v421, %v422
        %v424 = vmul.f32 %v423, %v392
        %v425 = vadd.f32 %v424, 1e-05
        %v426 = vrsqrt.pop %v425
        %v427 = vld [vmem:[%s353] sm:$0x1]
        %v428 = vmul.f32 %v426, %v427
        %v429 = vld [vmem:[%s356] sm:$0x1]
        %v430 = vmul.f32 %v393, %v428
        %v431 = vsub.f32 %v429, %v430
        %v432 = vlaneseq
        %v433 = vshrl.u32 %v432, 7
        %v434 = vsub.s32 0, %v433
        %v435 = vrot.slane %v428, %v434
        %v436 = vmul.f32 %v369, %v435
        %v437 = vmul.f32 %v370, %v435
        %v438 = vmul.f32 %v371, %v435
        %v439 = vmul.f32 %v372, %v435
        %v440 = vmul.f32 %v373, %v435
        %v441 = vmul.f32 %v374, %v435
        %v442 = vmul.f32 %v375, %v435
        %v443 = vmul.f32 %v376, %v435
        %v445 = vlaneseq
        %v446 = vshrl.u32 %v445, 7
        %v447 = vsub.s32 0, %v446
        %v448 = vrot.slane %v431, %v447
        %v450 = vadd.f32 %v436, %v448
        %v451 = vadd.f32 %v437, %v448
        %v452 = vadd.f32 %v438, %v448
        %v453 = vadd.f32 %v439, %v448
        %v454 = vadd.f32 %v440, %v448
        %v455 = vadd.f32 %v441, %v448
        %v456 = vadd.f32 %v442, %v448
        %v457 = vadd.f32 %v443, %v448
        %458 = vst [vmem:[%s340] sm:$0xff] %v450
        %459 = vst [vmem:[%s340 + $0x8] sm:$0xff] %v451
        %460 = vst [vmem:[%s340 + $0x10] sm:$0xff] %v452
        %461 = vst [vmem:[%s340 + $0x18] sm:$0xff] %v453
        %462 = vst [vmem:[%s340 + $0x20] sm:$0xff] %v454
        %463 = vst [vmem:[%s340 + $0x28] sm:$0xff] %v455
        %464 = vst [vmem:[%s340 + $0x30] sm:$0xff] %v456
        %465 = vst [vmem:[%s340 + $0x38] sm:$0xf] %v457
        %v466 = vld [vmem:[%s359] sm:$0x1]
        %v467 = vmul.f32 %v466, 0.9
        %v468 = vmul.f32 %v393, 0.1
        %v469 = vadd.f32 %v467, %v468
        %470 = vst [vmem:[%s365] sm:$0x1] %v469
        %v471 = vld [vmem:[%s362] sm:$0x1]
        %v472 = vmul.f32 %v471, 0.9
        %v473 = vmul.f32 %v424, 1.0169492
        %v474 = vmul.f32 %v473, 0.1
        %v475 = vadd.f32 %v472, %v474
        %476 = vst [vmem:[%s368] sm:$0x1] %v475
        %s477 = sand.u32 %s163, 1
        %s478 = scalar_lea.sflag [#allocation4], %s477
        %s479 = sand.u32 %s163, 1
        %s480 = smul.addr %s479, 64
        %s481 = scalar_lea.vmem [#allocation5], %s480
        %p482 = scmp.lt.s32.totalorder %s25, 2
        %s483 = scalar_select %p482, %s25, 2
        %s484 = scalar_lea.vmem %s6, %s483
        %p485 = scmp.lt.s32.totalorder %s25, 2
        %s486 = scalar_select %p485, %s25, 2
        %s487 = scalar_lea.vmem %s7, %s486
        // Predicated region
        $region45: #{normalizer_forward.1} parent=39 // pred_check
          %p488 = pneg %p173
        $region46: #{normalizer_forward.1} parent=39 // pred_check_branch
          %490 = sbr.rel (%p488) target = $region48
        $region47: #{normalizer_forward.1} parent=39 // pred_region
          %s492 = ssub.s32 1024, 1024
          %493 = vsyncadd %s478, %s492
          %s494 = smul.addr %s25, 128
          %s495 = scalar_lea.hbm %s5, %s494
          %s496 = sshll.u32 %s481, 4
          %s497 = int_to_ptr.vmem [resolvable:$true] %s496
          %502 = dma.vmem_to_hbm [thread:$0]  %s497, 1024, %s495, %s478, 128, 384, 8
        $region48: #{normalizer_forward.1} parent=39 // pred_fallthru
          _
        // Predicated region
        $region49: #{normalizer_forward.1} parent=39 // pred_check
          %p503 = pneg %p199
        $region50: #{normalizer_forward.1} parent=39 // pred_check_branch
          %505 = sbr.rel (%p503) target = $region52
        $region51: #{normalizer_forward.1} parent=39 // pred_region
          _
        $region52: #{normalizer_forward.1} parent=39 // pred_fallthru
          _
        // Predicated region
        $region53: #{normalizer_forward.1} parent=39 // pred_check
          %p506 = pneg %p225
        $region54: #{normalizer_forward.1} parent=39 // pred_check_branch
          %508 = sbr.rel (%p506) target = $region56
        $region55: #{normalizer_forward.1} parent=39 // pred_region
          _
        $region56: #{normalizer_forward.1} parent=39 // pred_fallthru
          _
      $region40: #{normalizer_forward.1} parent=5 // pred_fallthru
        _
      %p509 = scmp.le.s32.totalorder 2, %s20
      // Predicated region
      $region57: #{normalizer_forward.1} parent=5 // pred_check
        %p510 = pneg %p509
      $region58: #{normalizer_forward.1} parent=5 // pred_check_branch
        %512 = sbr.rel (%p510) target = $region60
      $region59: #{normalizer_forward.1} parent=5 // pred_region
        %s513 = ssub.s32 %s20, 2
        // Predicated region
        $region61: #{normalizer_forward.1} parent=59 // pred_check
          %p514 = pneg %p179
        $region62: #{normalizer_forward.1} parent=59 // pred_check_branch
          %516 = sbr.rel (%p514) target = $region64
        $region63: #{normalizer_forward.1} parent=59 // pred_region
          %s517 = sand.u32 %s164, 1
          %s518 = scalar_lea.sflag [#allocation4], %s517
          %s519 = sand.u32 %s164, 1
          %s520 = smul.addr %s519, 64
          %s521 = scalar_lea.vmem [#allocation5], %s520
          %522 = dma.done %s518, 1024
        $region64: #{normalizer_forward.1} parent=59 // pred_fallthru
          _
        // Predicated region
        $region65: #{normalizer_forward.1} parent=59 // pred_check
          %p523 = pneg %p205
        $region66: #{normalizer_forward.1} parent=59 // pred_check_branch
          %525 = sbr.rel (%p523) target = $region68
        $region67: #{normalizer_forward.1} parent=59 // pred_region
          %p526 = scmp.lt.s32.totalorder %s26, 2
          %s527 = scalar_select %p526, %s26, 2
          %s528 = scalar_lea.vmem %s6, %s527
        $region68: #{normalizer_forward.1} parent=59 // pred_fallthru
          _
        // Predicated region
        $region69: #{normalizer_forward.1} parent=59 // pred_check
          %p529 = pneg %p231
        $region70: #{normalizer_forward.1} parent=59 // pred_check_branch
          %531 = sbr.rel (%p529) target = $region72
        $region71: #{normalizer_forward.1} parent=59 // pred_region
          %p532 = scmp.lt.s32.totalorder %s26, 2
          %s533 = scalar_select %p532, %s26, 2
          %s534 = scalar_lea.vmem %s7, %s533
        $region72: #{normalizer_forward.1} parent=59 // pred_fallthru
          _
      $region60: #{normalizer_forward.1} parent=5 // pred_fallthru
        _
    $region6: #{normalizer_forward.1} parent=1 // loop_footer
      %s24 = sadd.s32 1, %s20
    $region7: #{normalizer_forward.1} parent=1 // loop_footer_branch
      %19 = sbr.rel target = $region3
    $region8: #{normalizer_forward.1} parent=1 // loop_exit
      _
    %535 = vsyncpa [#allocation3], 1
    %s536 = scalar_lea.sflag [#allocation3], 1
    %537 = vsyncpa %s536, 1
    %538 = vsyncpa [#allocation4], 1
    %s539 = scalar_lea.sflag [#allocation4], 1
    %540 = vsyncpa %s539, 1

</llo_original>
